<compile_context>
chip_gen: v5e
topology: v5e:2x2
jax: 0.10.0
libtpu: 0.0.40
codegen_flags: <defaults>
</compile_context>

<pallas_src>
import jax
import jax.numpy as jnp
from jax.experimental import pallas as pl
from jax.experimental.pallas import tpu as pltpu


def _bn_byol_kernel(x_ref, scale_ref, bias_ref, o_ref):
    # scale/bias are (1, C) float32 tiles, VMEM-resident (constant index_map),
    # broadcast over the row axis of the (tm, C) x tile.  Compute in f32.
    x = x_ref[...].astype(jnp.float32)
    o_ref[...] = (x * scale_ref[...] + bias_ref[...]).astype(o_ref.dtype)


def _pick_row_tile(n_rows, n_chan, itemsize, vmem_buffer_budget=32 << 20):
    """Largest 8/16/32-aligned row tile whose 4 double-buffered tiles fit the budget."""
    if itemsize >= 4:
        sub = 8
    elif itemsize == 2:
        sub = 16
    else:
        sub = 32
    # 4 buffers: double-buffered x input tile + double-buffered output tile.
    tm = vmem_buffer_budget // (4 * n_chan * itemsize)
    tm = (tm // sub) * sub
    tm = max(256, min(tm, 2048))          # cap & floor (floor amortizes ~0.35us/step)
    tm = (tm // sub) * sub
    n_ceil = ((n_rows + sub - 1) // sub) * sub
    tm = min(tm, n_ceil)                  # don't exceed (rounded-up) row count
    return max(tm, sub)


def batchnorm_byol(x, running_mean, running_var, gamma, beta, eps=1e-5):
    """BatchNorm_ByoL forward. Per-channel params (C,) broadcast over last axis of x."""
    orig_shape = x.shape
    C = orig_shape[-1]
    x2 = x.reshape(-1, C)
    N = x2.shape[0]
    itemsize = jnp.dtype(x.dtype).itemsize

    # --- Fold the 4 per-channel params into (scale, bias) once, in f32. ---
    inv_std = 1.0 / jnp.sqrt(running_var.astype(jnp.float32) + eps)
    scale = gamma.astype(jnp.float32) * inv_std
    bias = beta.astype(jnp.float32) - running_mean.astype(jnp.float32) * scale
    scale2 = scale.reshape(1, C)          # stays float32 (resident in VMEM)
    bias2 = bias.reshape(1, C)

    # --- Tile sizing + explicit VMEM limit (generation-aware via budget). ---
    tm = _pick_row_tile(N, C, itemsize)
    grid = (pl.cdiv(N, tm),)              # ragged last block handled by masked stores

    buf_bytes = 4 * tm * C * itemsize     # 2x x-tile + 2x out-tile (double buffered)
    param_bytes = 4 * C * 4 * 2           # scale + bias, double buffered, f32
    vmem_limit = buf_bytes + param_bytes + (2 << 20)      # slack
    vmem_limit = int(min(max(vmem_limit, 16 << 20), 48 << 20))  # fits v7x's 64MiB/TC

    param_spec = pl.BlockSpec((1, C), lambda i: (0, 0))   # constant block -> resident

    out = pl.pallas_call(
        _bn_byol_kernel,
        out_shape=jax.ShapeDtypeStruct((N, C), x.dtype),
        grid_spec=pltpu.PrefetchScalarGridSpec(
            num_scalar_prefetch=0,
            grid=grid,
            in_specs=[
                pl.BlockSpec((tm, C), lambda i: (i, 0)),  # x rows (streamed)
                param_spec,                               # scale (resident, f32)
                param_spec,                               # bias  (resident, f32)
            ],
            out_specs=pl.BlockSpec((tm, C), lambda i: (i, 0)),
        ),
        compiler_params=pltpu.CompilerParams(
            dimension_semantics=("parallel",),            # rows independent -> megacore
            vmem_limit_bytes=vmem_limit,
        ),
    )(x2, scale2, bias2)

    return out.reshape(orig_shape)


if __name__ == "__main__":
    # Small, TPU-friendly shapes; N deliberately NOT a multiple of 8 (and not of
    # tm) so the ragged-last-block path with masked stores is exercised.
    # (Module default is C=2048; kept small here for a quick check.)
    eps = 1e-5
    key = jax.random.PRNGKey(0)
    kx, kg, kb, km, kv = jax.random.split(key, 5)

    N, C = 10, 128
    x = jax.random.normal(kx, (N, C), dtype=jnp.float32)
    gamma = 1.0 + 0.1 * jax.random.normal(kg, (C,), dtype=jnp.float32)
    beta = 0.1 * jax.random.normal(kb, (C,), dtype=jnp.float32)
    running_mean = 0.1 * jax.random.normal(km, (C,), dtype=jnp.float32)
    running_var = 1.0 + 0.1 * jax.random.uniform(kv, (C,), dtype=jnp.float32)

    out = batchnorm_byol(x, running_mean, running_var, gamma, beta, eps=eps)
    out = jax.block_until_ready(out)

    # Reference check in plain JAX (original PyTorch formulation).
    ref = (x - running_mean) / jnp.sqrt(running_var + eps) * gamma + beta
    assert jnp.allclose(out, ref, atol=1e-5, rtol=1e-5), "f32 mismatch vs reference"

    # Mixed-precision path: bf16 activations, f32 resident params, f32 compute.
    xb = x.astype(jnp.bfloat16)
    out_b = batchnorm_byol(xb, running_mean, running_var, gamma, beta, eps=eps)
    out_b = jax.block_until_ready(out_b)
    ref_b = ((xb.astype(jnp.float32) - running_mean)
             / jnp.sqrt(running_var + eps) * gamma + beta).astype(jnp.bfloat16)
    assert jnp.allclose(out_b.astype(jnp.float32), ref_b.astype(jnp.float32),
                        atol=2e-2, rtol=2e-2), "bf16 mismatch vs reference"

    print("KERNEL_OK")
</pallas_src>

<mosaic_0001>
module attributes {stable_mosaic.version = 11 : i64} {
  func.func @_bn_byol_kernel(%arg0: i32, %arg1: memref<16x128xf32, #tpu.memory_space<vmem>>, %arg2: memref<1x128xf32, #tpu.memory_space<vmem>>, %arg3: memref<1x128xf32, #tpu.memory_space<vmem>>, %arg4: memref<16x128xf32, #tpu.memory_space<vmem>>) attributes {dimension_semantics = [#tpu.dimension_semantics<parallel>], iteration_bounds = array<i64: 1>, scalar_prefetch = 0 : i64, scratch_operands = 0 : i64, tpu.core_type = #tpu.core_type<tc>, window_params = [{transform_indices = @transform_0, window_bounds = array<i64: 16, 128>}, {pipeline_mode = #tpu.pipeline_mode<synchronous>, transform_indices = @transform_1, window_bounds = array<i64: 1, 128>}, {pipeline_mode = #tpu.pipeline_mode<synchronous>, transform_indices = @transform_2, window_bounds = array<i64: 1, 128>}, {transform_indices = @transform_3, window_bounds = array<i64: 16, 128>}]} {
    %c0 = arith.constant 0 : index
    %c0_0 = arith.constant 0 : index
    %0 = vector.load %arg1[%c0, %c0_0] : memref<16x128xf32, #tpu.memory_space<vmem>>, vector<16x128xf32>
    %c0_1 = arith.constant 0 : index
    %c0_2 = arith.constant 0 : index
    %1 = vector.load %arg2[%c0_1, %c0_2] : memref<1x128xf32, #tpu.memory_space<vmem>>, vector<1x128xf32>
    %2 = vector.broadcast %1 : vector<1x128xf32> to vector<16x128xf32>
    %3 = arith.mulf %0, %2 : vector<16x128xf32>
    %c0_3 = arith.constant 0 : index
    %c0_4 = arith.constant 0 : index
    %4 = vector.load %arg3[%c0_3, %c0_4] : memref<1x128xf32, #tpu.memory_space<vmem>>, vector<1x128xf32>
    %5 = vector.broadcast %4 : vector<1x128xf32> to vector<16x128xf32>
    %6 = arith.addf %3, %5 : vector<16x128xf32>
    %c0_5 = arith.constant 0 : index
    %c0_6 = arith.constant 0 : index
    %7 = vector.load %arg4[%c0_5, %c0_6] : memref<16x128xf32, #tpu.memory_space<vmem>>, vector<16x128xf32>
    tpu.vector_store %arg4[%c0_5, %c0_6], %6 {strides = array<i32>} : memref<16x128xf32, #tpu.memory_space<vmem>>, vector<16x128xf32>,
    return
  }
  func.func @transform_0(%arg0: i32) -> (i32, i32) {
    %c0_i32 = arith.constant 0 : i32
    %c0_i32_0 = arith.constant 0 : i32
    return %arg0, %c0_i32 : i32, i32
  }
  func.func @transform_1(%arg0: i32) -> (i32, i32) {
    %c0_i32 = arith.constant 0 : i32
    %c0_i32_0 = arith.constant 0 : i32
    %c0_i32_1 = arith.constant 0 : i32
    return %c0_i32, %c0_i32_0 : i32, i32
  }
  func.func @transform_2(%arg0: i32) -> (i32, i32) {
    %c0_i32 = arith.constant 0 : i32
    %c0_i32_0 = arith.constant 0 : i32
    %c0_i32_1 = arith.constant 0 : i32
    return %c0_i32, %c0_i32_0 : i32, i32
  }
  func.func @transform_3(%arg0: i32) -> (i32, i32) {
    %c0_i32 = arith.constant 0 : i32
    %c0_i32_0 = arith.constant 0 : i32
    return %arg0, %c0_i32 : i32, i32
  }
}

</mosaic_0001>

<llo_original>
// kernel: tpu_custom_call.1
$region0: #{tpu_custom_call.1}
  #allocation0 [shape = 'u32[]', space=smem, size = 0x4, offset = 0x4, fixed_abs, tag = 'smem constant byte address 0x4 - core index']
  #allocation1 [shape = 'u32[72,128]{1,0:T(1,128)}', space=vmem, size = 0x9000, scoped, tag = 'internal scratch']
  %s0 = inlined_call_operand.hbm [shape: f32[10,128], index: 0, kind: input, shape index: {}]
  %s1 = inlined_call_operand.hbm [shape: f32[1,128], index: 1, kind: input, shape index: {}]
  %s2 = inlined_call_operand.vmem [shape: f32[1,128], index: 2, kind: input, shape index: {}]
  %s3 = inlined_call_operand.hbm [shape: f32[10,128], index: 3, kind: output, shape index: {}]
  %s4 = sld [smem:[#allocation0]]
  $region30: #{tpu_custom_call.1} parent=0
    _
  %s6 = ssub.s32 1, %s4
  %s7 = scalar_select 0, %s6, %s4
  $region1: #{tpu_custom_call.1} parent=0
    #allocation2 [shape = 'u8[8192]{0}', space=vmem, size = 0x2000, scoped, tag = 'input window, operand 0, single buffered']
    #allocation3 [shape = 's32[1]{0}', space=sflag, size = 0x4, scoped, tag = 'scoped memory for tpu_custom_call.1']
    #allocation4 [shape = 's32[1]{0}', space=sflag, size = 0x4, scoped, tag = 'scoped memory for tpu_custom_call.1']
    #allocation5 [shape = 'u8[512]{0}', space=vmem, size = 0x400, scoped, tag = 'input window, operand 1, single buffered']
    #allocation6 [shape = 's32[1]{0}', space=sflag, size = 0x4, scoped, tag = 'scoped memory for tpu_custom_call.1']
    #allocation7 [shape = 'u8[8192]{0}', space=vmem, size = 0x2000, scoped, tag = 'output window, operand 0, single buffered']
    %8 = vsyncpa [#allocation3], 0
    %9 = vsyncpa [#allocation6], 0
    %10 = vsyncpa [#allocation4], 0
    // Predicated region
    $region2: #{tpu_custom_call.1} parent=1 // pred_check
      _
    $region3: #{tpu_custom_call.1} parent=1 // pred_check_branch
      %12 = sbr.rel (0) target = $region5
    $region4: #{tpu_custom_call.1} parent=1 // pred_region
      %14 = vsyncadd [#allocation3], 0
      %s15 = sshll.u32 %s0, 4
      %s16 = int_to_ptr.hbm [resolvable:$true] %s15
      %s17 = sshll.u32 [#allocation2], 4
      %s18 = int_to_ptr.vmem [resolvable:$true] %s17
      %23 = dma.hbm_to_vmem [thread:$0]  %s16, 256, %s18, [#allocation3], 128, 128, 8
    $region5: #{tpu_custom_call.1} parent=1 // pred_fallthru
      _
    // Predicated region
    $region6: #{tpu_custom_call.1} parent=1 // pred_check
      _
    $region7: #{tpu_custom_call.1} parent=1 // pred_check_branch
      %25 = sbr.rel (0) target = $region9
    $region8: #{tpu_custom_call.1} parent=1 // pred_region
      %27 = vsyncadd [#allocation6], 0
      %s29 = sshll.u32 %s1, 4
      %s30 = int_to_ptr.hbm [resolvable:$true] %s29
      %s31 = sshll.u32 [#allocation5], 4
      %s32 = int_to_ptr.vmem [resolvable:$true] %s31
      %34 = dma.hbm_to_vmem [thread:$0]  %s30, 16, %s32, [#allocation6]
    $region9: #{tpu_custom_call.1} parent=1 // pred_fallthru
      _
    // Predicated region
    $region10: #{tpu_custom_call.1} parent=1 // pred_check
      _
    $region11: #{tpu_custom_call.1} parent=1 // pred_check_branch
      %36 = sbr.rel (0) target = $region13
    $region12: #{tpu_custom_call.1} parent=1 // pred_region
      _
    $region13: #{tpu_custom_call.1} parent=1 // pred_fallthru
      _
    // Predicated region
    $region14: #{tpu_custom_call.1} parent=1 // pred_check
      _
    $region15: #{tpu_custom_call.1} parent=1 // pred_check_branch
      %38 = sbr.rel (0) target = $region17
    $region16: #{tpu_custom_call.1} parent=1 // pred_region
      %40 = dma.done [#allocation3], 256
    $region17: #{tpu_custom_call.1} parent=1 // pred_fallthru
      _
    // Predicated region
    $region18: #{tpu_custom_call.1} parent=1 // pred_check
      _
    $region19: #{tpu_custom_call.1} parent=1 // pred_check_branch
      %42 = sbr.rel (0) target = $region21
    $region20: #{tpu_custom_call.1} parent=1 // pred_region
      %44 = dma.done [#allocation6], 16
    $region21: #{tpu_custom_call.1} parent=1 // pred_fallthru
      _
    %v45 = vld [vmem:[#allocation2] sm:$0xff]
    %v46 = vld [vmem:[#allocation2 + $0x8] sm:$0xff]
    %v47 = vld [vmem:[#allocation5] sm:$0x1]
    %v49 = vperm.slane %v47, 0
    %v51 = vmul.f32 %v45, %v49
    %v52 = vmul.f32 %v46, %v49
    %v53 = vld [vmem:[%s2] sm:$0x1]
    %v55 = vperm.slane %v53, 0
    %v57 = vadd.f32 %v51, %v55
    %v58 = vadd.f32 %v52, %v55
    %59 = vst [vmem:[#allocation7] sm:$0xff] %v57
    %60 = vst [vmem:[#allocation7 + $0x8] sm:$0xff] %v58
    // Predicated region
    $region22: #{tpu_custom_call.1} parent=1 // pred_check
      _
    $region23: #{tpu_custom_call.1} parent=1 // pred_check_branch
      %62 = sbr.rel (0) target = $region25
    $region24: #{tpu_custom_call.1} parent=1 // pred_region
      %64 = vsyncadd [#allocation4], 0
      %s65 = sshll.u32 [#allocation7], 4
      %s66 = int_to_ptr.vmem [resolvable:$true] %s65
      %s67 = sshll.u32 %s3, 4
      %s68 = int_to_ptr.hbm [resolvable:$true] %s67
      %73 = dma.vmem_to_hbm [thread:$0]  %s66, 256, %s68, [#allocation4], 128, 128, 8
    $region25: #{tpu_custom_call.1} parent=1 // pred_fallthru
      _
    // Predicated region
    $region26: #{tpu_custom_call.1} parent=1 // pred_check
      _
    $region27: #{tpu_custom_call.1} parent=1 // pred_check_branch
      %75 = sbr.rel (0) target = $region29
    $region28: #{tpu_custom_call.1} parent=1 // pred_region
      %77 = dma.done [#allocation4], 256
    $region29: #{tpu_custom_call.1} parent=1 // pred_fallthru
      _
    %78 = vsyncpa [#allocation3], 1
    %79 = vsyncpa [#allocation6], 1
    %80 = vsyncpa [#allocation4], 1

</llo_original>
